<compile_context>
chip_gen: v6e
topology: v6e:2x2x1
jax: 0.10.0
libtpu: 0.0.40
codegen_flags: <defaults>
</compile_context>

<pallas_src>
import functools
import math

import jax
import jax.numpy as jnp
import numpy as np
from jax import lax
from jax.experimental import pallas as pl
from jax.experimental.pallas import tpu as pltpu


# -----------------------------------------------------------------------------
# Kernel 1: GroupNorm affine (precomputed per-(B,C) scale/shift) + 1x1 QKV conv.
# -----------------------------------------------------------------------------
def _norm_qkv_kernel(x_ref, scale_ref, shift_ref, wqkv_ref, bqkv_ref, qkv_ref):
    x = x_ref[0].astype(jnp.float32)                              # (C, Tt) f32
    xn = (x * scale_ref[0] + shift_ref[0]).astype(jnp.bfloat16)   # GroupNorm32 affine
    # qkv = Conv1d(C, 3C, 1): bf16 MXU operands, f32 accumulation.  W_qkv rows are
    # already permuted to [q|k|v]-contiguous and scale-folded in the wrapper.
    qkv = jnp.dot(wqkv_ref[...], xn,
                  preferred_element_type=jnp.float32) + bqkv_ref[...]
    qkv_ref[0] = qkv.astype(qkv_ref.dtype)                        # bf16 out


# -----------------------------------------------------------------------------
# Kernel 2: flash-style multi-head attention + 1x1 proj conv + residual.
# grid = (B, q-tiles, kv-tiles); kv innermost ("arbitrary"), others "parallel".
# -----------------------------------------------------------------------------
def _flash_attn_proj_kernel(x_ref, q_ref, k_ref, v_ref, mask_ref, wproj_ref,
                            bproj_ref, o_ref, m_sc, l_sc, acc_sc,
                            *, num_heads, use_bf16_exp, apply_mask):
    ki = pl.program_id(2)

    @pl.when(ki == 0)
    def _():
        m_sc[...] = jnp.full_like(m_sc, -jnp.inf)
        l_sc[...] = jnp.zeros_like(l_sc)
        acc_sc[...] = jnp.zeros_like(acc_sc)

    C, Tq = q_ref.shape[1], q_ref.shape[2]
    Tk = k_ref.shape[2]
    ch = C // num_heads

    q = q_ref[0].reshape(num_heads, ch, Tq)                       # bf16 (scale folded)
    k = k_ref[0].reshape(num_heads, ch, Tk)
    v = v_ref[0].reshape(num_heads, ch, Tk)

    # scores[h, s, t] = sum_c k[h,c,s] * q[h,c,t]; keys on the sublane axis so the
    # (unnormalized) probs @ V matmul below contracts in canonical MXU orientation.
    w = lax.dot_general(k, q, dimension_numbers=(((1,), (1,)), ((0,), (0,))),
                        preferred_element_type=jnp.float32)       # (H, Tk, Tq) f32
    if apply_mask:
        # Cheap additive key mask (0 / -1e30) broadcast from a (Tk, 1) column.
        w = w + mask_ref[...].reshape(1, Tk, 1)

    m_prev = m_sc[...]                                            # (H, 1, Tq)
    m_new = jnp.maximum(m_prev, jnp.max(w, axis=1, keepdims=True))
    alpha = jnp.exp(m_prev - m_new)                               # f32 rescale factor

    s = w - m_new
    if use_bf16_exp:
        # bf16 EUP exp on v6e/v7x; values are <= 0 so exp is in [0, 1].
        p = jnp.exp(s.astype(jnp.bfloat16))                       # (H, Tk, Tq) bf16
        l_add = jnp.sum(p.astype(jnp.float32), axis=1, keepdims=True)
        p_mm = p
    else:
        p = jnp.exp(s)                                            # f32 exp (v5e path)
        l_add = jnp.sum(p, axis=1, keepdims=True)
        p_mm = p.astype(jnp.bfloat16)

    l_sc[...] = alpha * l_sc[...] + l_add
    # Unnormalized accumulate; softmax normalization is folded into the epilogue.
    acc_sc[...] = alpha * acc_sc[...] + lax.dot_general(
        v, p_mm, dimension_numbers=(((2,), (1,)), ((0,), (0,))),
        preferred_element_type=jnp.float32)                       # (H, ch, Tq)
    m_sc[...] = m_new

    @pl.when(ki == pl.num_programs(2) - 1)
    def _():
        att = acc_sc[...] * pl.reciprocal(l_sc[...], approx=True)  # fold 1/denominator
        att = att.astype(jnp.bfloat16).reshape(C, Tq)
        # proj_out = Conv1d(C, C, 1) + residual (x re-read from its input block here).
        hproj = jnp.dot(wproj_ref[...], att,
                        preferred_element_type=jnp.float32) + bproj_ref[...]
        o_ref[0] = (x_ref[0].astype(jnp.float32) + hproj).astype(o_ref.dtype)


# -----------------------------------------------------------------------------
# Helpers.
# -----------------------------------------------------------------------------
def _tile_candidates(Tp, cap):
    return [t for t in range(128, min(Tp, cap) + 1, 128) if Tp % t == 0]


def _choose_tile(Tp, cap=512):
    return max(_tile_candidates(Tp, cap))


def _choose_q_tile(B, Tp, cap=512):
    cands = sorted(_tile_candidates(Tp, cap), reverse=True)
    for t in cands:
        if B * (Tp // t) >= 4:      # enough parallel grid steps for dual-TC (v7x) parts
            return t
    return cands[0]


def _vmem_limit_bytes(est):
    """Per-generation scoped VMEM limit with headroom below physical capacity."""
    cap = None
    try:
        cap = getattr(pltpu.get_tpu_info(), "vmem_capacity_bytes", None)
    except Exception:
        cap = None
    if cap is None:
        cap = 128 * 1024 * 1024
    if cap <= 80 * 1024 * 1024:
        ceiling = 52 * 1024 * 1024      # v7x-class (64 MiB physical per TensorCore)
    else:
        ceiling = 100 * 1024 * 1024     # 128 MiB parts (v5e / v6e)
    return int(min(max(int(est), 32 * 1024 * 1024), ceiling))


def _use_bf16_exp():
    """bf16 EUP exists on v6e/v7x; keep f32 exp on v5-class and unknown parts."""
    try:
        kind = jax.devices()[0].device_kind.lower()
    except Exception:
        return False
    return ("v6" in kind) or ("v7" in kind)


# -----------------------------------------------------------------------------
# Wrapper.
# -----------------------------------------------------------------------------
def attention_block(x, params, *, num_heads, num_groups=32, eps=1e-5):
    """x: [B, C, H, W] float32.  Returns [B, C, H, W]."""
    B, C, H, W = x.shape
    T = H * W
    Tp = ((T + 127) // 128) * 128          # lane-dense last dim (pad; keys masked)
    wqkv, bqkv, wproj, bproj, gamma, beta = params
    ch = C // num_heads

    x3 = x.reshape(B, C, T)
    if Tp != T:
        x3 = jnp.pad(x3, ((0, 0), (0, 0), (0, Tp - T)))

    # ---- GroupNorm(32, C) statistics: tiny wrapper-side reduction (B*C scalars) so
    # ---- both Pallas grids can be fully parallel over batch / sequence tiles.
    xf = x3.astype(jnp.float32)
    gpg = C // num_groups
    csum = jnp.sum(xf, axis=2)                          # (B, C); zero padding is inert
    csq = jnp.sum(xf * xf, axis=2)
    n = jnp.float32(gpg * T)
    gsum = csum.reshape(B, num_groups, gpg).sum(axis=2)
    gsq = csq.reshape(B, num_groups, gpg).sum(axis=2)
    mean_g = gsum / n
    # guard against E[x^2] - mean^2 cancellation going slightly negative in f32
    var_g = jnp.maximum(gsq / n - mean_g * mean_g, 0.0)
    inv_g = lax.rsqrt(var_g + eps)
    mean_c = jnp.repeat(mean_g, gpg, axis=1)            # (B, C)
    inv_c = jnp.repeat(inv_g, gpg, axis=1)
    g1 = gamma.reshape(1, C).astype(jnp.float32)
    b1 = beta.reshape(1, C).astype(jnp.float32)
    scale_c = (inv_c * g1)[..., None]                   # (B, C, 1)
    shift_c = (b1 - mean_c * inv_c * g1)[..., None]     # (B, C, 1)

    # ---- Reorder W_qkv / b_qkv rows to [all q-heads | all k-heads | all v-heads] so
    # ---- the attention kernel slices three contiguous (C, T) slabs, and fold the
    # ---- full attention scale 1/sqrt(ch) into the q rows (== reference ch^-1/4 on
    # ---- both q and k; applied exactly once, here).
    rows = np.arange(3 * C).reshape(num_heads, 3, ch)
    perm = np.concatenate([rows[:, 0, :].ravel(),       # q rows, head-major
                           rows[:, 1, :].ravel(),       # k rows
                           rows[:, 2, :].ravel()])      # v rows
    fold = np.ones((3 * C, 1), np.float32)
    fold[:C] = 1.0 / math.sqrt(ch)
    wqkv_b = (wqkv[perm] * fold).astype(jnp.bfloat16)
    bqkv_f = (bqkv[perm] * fold).astype(jnp.float32)
    wproj_b = wproj.astype(jnp.bfloat16)
    bproj_f = bproj.astype(jnp.float32)

    # ---------------- kernel 1: GroupNorm affine + 1x1 QKV conv ----------------
    Tt = _choose_tile(Tp)
    n_t = Tp // Tt
    est1 = 1.5 * (2 * C * Tt * 4 + 2 * 3 * C * Tt * 2              # x in / qkv out (x2 buf)
                  + 2 * (3 * C * C * 2 + 3 * C * 4 + 2 * C * 4)    # weights / affine (x2 buf)
                  + C * Tt * (4 + 4 + 2) + 3 * C * Tt * (4 + 2))   # in-kernel temporaries
    qkv = pl.pallas_call(
        _norm_qkv_kernel,
        out_shape=jax.ShapeDtypeStruct((B, 3 * C, Tp), jnp.bfloat16),
        grid_spec=pltpu.PrefetchScalarGridSpec(
            num_scalar_prefetch=0,
            grid=(B, n_t),
            in_specs=[
                pl.BlockSpec((1, C, Tt), lambda b, t: (b, 0, t)),   # x
                pl.BlockSpec((1, C, 1), lambda b, t: (b, 0, 0)),    # scale_c
                pl.BlockSpec((1, C, 1), lambda b, t: (b, 0, 0)),    # shift_c
                pl.BlockSpec((3 * C, C), lambda b, t: (0, 0)),      # W_qkv (bf16, folded)
                pl.BlockSpec((3 * C, 1), lambda b, t: (0, 0)),      # b_qkv (folded)
            ],
            out_specs=pl.BlockSpec((1, 3 * C, Tt), lambda b, t: (b, 0, t)),
        ),
        compiler_params=pltpu.CompilerParams(
            dimension_semantics=("parallel", "parallel"),
            vmem_limit_bytes=_vmem_limit_bytes(est1)),
    )(x3, scale_c, shift_c, wqkv_b, bqkv_f)

    # ---------------- kernel 2: flash attention + proj + residual ----------------
    Tq = _choose_q_tile(B, Tp)
    Tk = _choose_tile(Tp)
    n_q, n_kv = Tp // Tq, Tp // Tk
    apply_mask = (Tp != T)
    key_mask = jnp.where(jnp.arange(Tp) < T, 0.0, -1e30).astype(jnp.float32)[:, None]
    use_bf16_exp = _use_bf16_exp()

    est2 = 1.5 * (2 * C * Tq * 4                                   # x (residual)
                  + 2 * C * Tq * 2 + 4 * C * Tk * 2                # q, k, v blocks (x2 buf)
                  + 2 * Tk * 4                                     # mask
                  + 2 * (C * C * 2 + C * 4)                        # W_proj / b_proj
                  + 2 * C * Tq * 4                                 # out
                  + (2 * num_heads * 8 * Tq + num_heads * ch * Tq) * 4   # m, l, acc scratch
                  + num_heads * Tk * Tq * (4 + 4 + 2)                    # scores / exp / probs
                  + num_heads * ch * Tq * 4 + C * Tq * (4 + 2))          # pv out / epilogue

    kernel = functools.partial(_flash_attn_proj_kernel, num_heads=num_heads,
                               use_bf16_exp=use_bf16_exp, apply_mask=apply_mask)
    out = pl.pallas_call(
        kernel,
        out_shape=jax.ShapeDtypeStruct((B, C, Tp), x.dtype),
        grid_spec=pltpu.PrefetchScalarGridSpec(
            num_scalar_prefetch=0,
            grid=(B, n_q, n_kv),
            in_specs=[
                pl.BlockSpec((1, C, Tq), lambda b, q, k: (b, 0, q)),  # x (residual)
                pl.BlockSpec((1, C, Tq), lambda b, q, k: (b, 0, q)),  # q rows [0:C]
                pl.BlockSpec((1, C, Tk), lambda b, q, k: (b, 1, k)),  # k rows [C:2C]
                pl.BlockSpec((1, C, Tk), lambda b, q, k: (b, 2, k)),  # v rows [2C:3C]
                pl.BlockSpec((Tk, 1), lambda b, q, k: (k, 0)),        # additive key mask
                pl.BlockSpec((C, C), lambda b, q, k: (0, 0)),         # W_proj (bf16)
                pl.BlockSpec((C, 1), lambda b, q, k: (0, 0)),         # b_proj
            ],
            out_specs=pl.BlockSpec((1, C, Tq), lambda b, q, k: (b, 0, q)),
            scratch_shapes=[
                pltpu.VMEM((num_heads, 1, Tq), jnp.float32),          # running max
                pltpu.VMEM((num_heads, 1, Tq), jnp.float32),          # running denom
                pltpu.VMEM((num_heads, ch, Tq), jnp.float32),         # unnormalized acc
            ],
        ),
        compiler_params=pltpu.CompilerParams(
            dimension_semantics=("parallel", "parallel", "arbitrary"),
            vmem_limit_bytes=_vmem_limit_bytes(est2)),
    )(x3, qkv, qkv, qkv, key_mask, wproj_b, bproj_f)

    return out[:, :, :T].reshape(B, C, H, W)


# -----------------------------------------------------------------------------
# Pure-JAX reference mirroring the PyTorch forward exactly (all f32).
# -----------------------------------------------------------------------------
def reference(x, params, *, num_heads, num_groups=32, eps=1e-5):
    B, C, H, W = x.shape
    T = H * W
    wqkv, bqkv, wproj, bproj, gamma, beta = params
    x3 = x.reshape(B, C, T).astype(jnp.float32)
    g = C // num_groups
    xg = x3.reshape(B, num_groups, g, T)
    mean = xg.mean(axis=(2, 3), keepdims=True)
    var = ((xg - mean) ** 2).mean(axis=(2, 3), keepdims=True)
    xn = ((xg - mean) / jnp.sqrt(var + eps)).reshape(B, C, T)
    xn = xn * gamma.reshape(1, C, 1) + beta.reshape(1, C, 1)
    qkv = jnp.einsum('oc,bct->bot', wqkv, xn) + bqkv.reshape(1, -1, 1)
    ch = C // num_heads
    qkv = qkv.reshape(B * num_heads, 3 * ch, T)
    q, k, v = qkv[:, :ch], qkv[:, ch:2 * ch], qkv[:, 2 * ch:]
    scale = 1.0 / math.sqrt(math.sqrt(ch))
    w = jnp.einsum('bct,bcs->bts', q * scale, k * scale)
    w = jax.nn.softmax(w, axis=-1)
    a = jnp.einsum('bts,bcs->bct', w, v).reshape(B, C, T)
    hh = jnp.einsum('oc,bct->bot', wproj, a) + bproj.reshape(1, -1, 1)
    return (x3 + hh).reshape(B, C, H, W)


def make_params(key, C, *, zero_proj):
    """Shapes follow AttentionBlock.__init__ (1x1 Conv1d kernels stored as [out, in])."""
    k1, k2, k3, k4 = jax.random.split(key, 4)
    lim = 1.0 / math.sqrt(C)
    wqkv = jax.random.uniform(k1, (3 * C, C), jnp.float32, -lim, lim)
    bqkv = jax.random.uniform(k2, (3 * C, 1), jnp.float32, -lim, lim)
    if zero_proj:
        wproj = jnp.zeros((C, C), jnp.float32)     # zero_module(conv_nd(1, C, C, 1))
        bproj = jnp.zeros((C, 1), jnp.float32)
    else:
        wproj = jax.random.uniform(k3, (C, C), jnp.float32, -lim, lim)
        bproj = jax.random.uniform(k4, (C, 1), jnp.float32, -lim, lim)
    gamma = jnp.ones((C, 1), jnp.float32)          # GroupNorm weight
    beta = jnp.zeros((C, 1), jnp.float32)          # GroupNorm bias
    return (wqkv, bqkv, wproj, bproj, gamma, beta)


if __name__ == "__main__":
    # Small shapes: B=2, C=64 (divisible by 32 for GroupNorm(32, C)), H=W=8 -> T=64
    # (padded to 128, exercising the key-padding mask); num_heads=4 -> 16 ch/head.
    B, C, Hs, Ws = 2, 64, 8, 8
    num_heads = 4

    key = jax.random.PRNGKey(0)
    kx, kp = jax.random.split(key)
    x = jax.random.normal(kx, (B, C, Hs, Ws), jnp.float32)

    # 1) Faithful to the module __init__ (proj_out zero-initialized): output == x.
    params = make_params(kp, C, zero_proj=True)
    out = jax.block_until_ready(attention_block(x, params, num_heads=num_heads))
    ref = reference(x, params, num_heads=num_heads)
    np.testing.assert_allclose(np.asarray(out), np.asarray(ref), rtol=1e-5, atol=1e-5)

    # 2) Non-zero projection exercises the full norm -> qkv -> flash attention ->
    #    proj -> residual path; bf16 MXU / bf16 exp => looser tolerance vs f32 ref.
    params_nz = make_params(kp, C, zero_proj=False)
    out_nz = jax.block_until_ready(attention_block(x, params_nz, num_heads=num_heads))
    ref_nz = reference(x, params_nz, num_heads=num_heads)
    np.testing.assert_allclose(np.asarray(out_nz), np.asarray(ref_nz), rtol=2e-2, atol=2e-2)

    print("KERNEL_OK")
</pallas_src>

<mosaic_0001>
module attributes {stable_mosaic.version = 11 : i64} {
  func.func @_norm_qkv_kernel(%arg0: i32, %arg1: i32, %arg2: memref<1x64x128xf32, #tpu.memory_space<vmem>>, %arg3: memref<1x64x1xf32, #tpu.memory_space<vmem>>, %arg4: memref<1x64x1xf32, #tpu.memory_space<vmem>>, %arg5: memref<192x64xbf16, #tpu.memory_space<vmem>>, %arg6: memref<192x1xf32, #tpu.memory_space<vmem>>, %arg7: memref<1x192x128xbf16, #tpu.memory_space<vmem>>) attributes {dimension_semantics = [#tpu.dimension_semantics<parallel>, #tpu.dimension_semantics<parallel>], iteration_bounds = array<i64: 2, 1>, scalar_prefetch = 0 : i64, scratch_operands = 0 : i64, tpu.core_type = #tpu.core_type<tc>, window_params = [{transform_indices = @transform_0, window_bounds = array<i64: 1, 64, 128>}, {transform_indices = @transform_1, window_bounds = array<i64: 1, 64, 1>}, {transform_indices = @transform_2, window_bounds = array<i64: 1, 64, 1>}, {pipeline_mode = #tpu.pipeline_mode<synchronous>, transform_indices = @transform_3, window_bounds = array<i64: 192, 64>}, {pipeline_mode = #tpu.pipeline_mode<synchronous>, transform_indices = @transform_4, window_bounds = array<i64: 192, 1>}, {transform_indices = @transform_5, window_bounds = array<i64: 1, 192, 128>}]} {
    %c0 = arith.constant 0 : index
    %c0_0 = arith.constant 0 : index
    %c0_1 = arith.constant 0 : index
    %0 = vector.load %arg2[%c0, %c0_0, %c0_1] : memref<1x64x128xf32, #tpu.memory_space<vmem>>, vector<1x64x128xf32>
    %1 = vector.shape_cast %0 : vector<1x64x128xf32> to vector<64x128xf32>
    %c0_2 = arith.constant 0 : index
    %c0_3 = arith.constant 0 : index
    %c0_4 = arith.constant 0 : index
    %2 = vector.load %arg3[%c0_2, %c0_3, %c0_4] : memref<1x64x1xf32, #tpu.memory_space<vmem>>, vector<1x64x1xf32>
    %3 = vector.shape_cast %2 : vector<1x64x1xf32> to vector<64x1xf32>
    %4 = vector.broadcast %3 : vector<64x1xf32> to vector<64x128xf32>
    %5 = arith.mulf %1, %4 : vector<64x128xf32>
    %c0_5 = arith.constant 0 : index
    %c0_6 = arith.constant 0 : index
    %c0_7 = arith.constant 0 : index
    %6 = vector.load %arg4[%c0_5, %c0_6, %c0_7] : memref<1x64x1xf32, #tpu.memory_space<vmem>>, vector<1x64x1xf32>
    %7 = vector.shape_cast %6 : vector<1x64x1xf32> to vector<64x1xf32>
    %8 = vector.broadcast %7 : vector<64x1xf32> to vector<64x128xf32>
    %9 = arith.addf %5, %8 : vector<64x128xf32>
    %10 = arith.truncf %9 : vector<64x128xf32> to vector<64x128xbf16>
    %c0_8 = arith.constant 0 : index
    %c0_9 = arith.constant 0 : index
    %11 = vector.load %arg5[%c0_8, %c0_9] : memref<192x64xbf16, #tpu.memory_space<vmem>>, vector<192x64xbf16>
    %cst = arith.constant dense<0.000000e+00> : vector<192x128xf32>
    %12 = tpu.matmul %11, %10, %cst {dimension_numbers = #tpu.dot_dimension_numbers<[1], [0], [0], [1], [0, 0, 1, 1], [], []>} : vector<192x64xbf16>, vector<64x128xbf16>, vector<192x128xf32> -> vector<192x128xf32>
    %c0_10 = arith.constant 0 : index
    %c0_11 = arith.constant 0 : index
    %13 = vector.load %arg6[%c0_10, %c0_11] : memref<192x1xf32, #tpu.memory_space<vmem>>, vector<192x1xf32>
    %14 = vector.broadcast %13 : vector<192x1xf32> to vector<192x128xf32>
    %15 = arith.addf %12, %14 : vector<192x128xf32>
    %16 = arith.truncf %15 : vector<192x128xf32> to vector<192x128xbf16>
    %c0_12 = arith.constant 0 : index
    %c0_13 = arith.constant 0 : index
    %c0_14 = arith.constant 0 : index
    %17 = vector.load %arg7[%c0_12, %c0_13, %c0_14] : memref<1x192x128xbf16, #tpu.memory_space<vmem>>, vector<1x192x128xbf16>
    %18 = vector.shape_cast %17 : vector<1x192x128xbf16> to vector<192x128xbf16>
    %19 = vector.shape_cast %16 : vector<192x128xbf16> to vector<1x192x128xbf16>
    tpu.vector_store %arg7[%c0_12, %c0_13, %c0_14], %19 {strides = array<i32>} : memref<1x192x128xbf16, #tpu.memory_space<vmem>>, vector<1x192x128xbf16>,
    return
  }
  func.func @transform_0(%arg0: i32, %arg1: i32) -> (i32, i32, i32) {
    %c0_i32 = arith.constant 0 : i32
    %c0_i32_0 = arith.constant 0 : i32
    return %arg0, %c0_i32, %arg1 : i32, i32, i32
  }
  func.func @transform_1(%arg0: i32, %arg1: i32) -> (i32, i32, i32) {
    %c0_i32 = arith.constant 0 : i32
    %c0_i32_0 = arith.constant 0 : i32
    %c0_i32_1 = arith.constant 0 : i32
    return %arg0, %c0_i32, %c0_i32_0 : i32, i32, i32
  }
  func.func @transform_2(%arg0: i32, %arg1: i32) -> (i32, i32, i32) {
    %c0_i32 = arith.constant 0 : i32
    %c0_i32_0 = arith.constant 0 : i32
    %c0_i32_1 = arith.constant 0 : i32
    return %arg0, %c0_i32, %c0_i32_0 : i32, i32, i32
  }
  func.func @transform_3(%arg0: i32, %arg1: i32) -> (i32, i32) {
    %c0_i32 = arith.constant 0 : i32
    %c0_i32_0 = arith.constant 0 : i32
    %c0_i32_1 = arith.constant 0 : i32
    return %c0_i32, %c0_i32_0 : i32, i32
  }
  func.func @transform_4(%arg0: i32, %arg1: i32) -> (i32, i32) {
    %c0_i32 = arith.constant 0 : i32
    %c0_i32_0 = arith.constant 0 : i32
    %c0_i32_1 = arith.constant 0 : i32
    return %c0_i32, %c0_i32_0 : i32, i32
  }
  func.func @transform_5(%arg0: i32, %arg1: i32) -> (i32, i32, i32) {
    %c0_i32 = arith.constant 0 : i32
    %c0_i32_0 = arith.constant 0 : i32
    return %arg0, %c0_i32, %arg1 : i32, i32, i32
  }
}

</mosaic_0001>

<llo_original>
// kernel: tpu_custom_call.1
$region0: #{tpu_custom_call.1}
  #allocation0 [shape = 'u32[]', space=smem, size = 0x4, offset = 0x4, fixed_abs, tag = 'smem constant byte address 0x4 - core index']
  #allocation1 [shape = 'u32[144,128]{1,0:T(1,128)}', space=vmem, size = 0x12000, scoped, tag = 'internal scratch']
  %s0 = inlined_call_operand.vmem [shape: f32[2,64,128], index: 0, kind: input, shape index: {}]
  %s1 = inlined_call_operand.vmem [shape: f32[2,64,1], index: 1, kind: input, shape index: {}]
  %s2 = inlined_call_operand.vmem [shape: f32[2,64,1], index: 2, kind: input, shape index: {}]
  %s3 = inlined_call_operand.vmem [shape: bf16[192,64], index: 3, kind: input, shape index: {}]
  %s4 = inlined_call_operand.vmem [shape: f32[192,1], index: 4, kind: input, shape index: {}]
  %s5 = inlined_call_operand.hbm [shape: bf16[2,192,128], index: 5, kind: output, shape index: {}]
  %s6 = sld [smem:[#allocation0]]
  $region53: #{tpu_custom_call.1} parent=0
    _
  %s8 = ssub.s32 1, %s6
  %s9 = scalar_select 0, %s8, %s6
  $region1: #{tpu_custom_call.1} parent=0
    #allocation2 [shape = 'u8[98304]{0}', space=vmem, size = 0x18000, scoped, tag = 'output window, operand 0']
    #allocation3 [shape = 's32[2]{0}', space=sflag, size = 0x8, scoped, tag = 'scoped memory for tpu_custom_call.1']
    %10 = vsyncpa [#allocation3], 0
    %s11 = scalar_lea.sflag [#allocation3], 1
    %12 = vsyncpa %s11, 0
    loop: start=0, step=1, limit=4
    $region2: #{tpu_custom_call.1} parent=1 // loop_pre_header
      _
    $region3: #{tpu_custom_call.1} parent=1 // loop_header
      %s14 = sphi 0, %s18
      %p15 = scmp.ge.s32.totalorder %s14, 4
      %s21 = sphi 0, %s33
      %s22 = sphi 0, %s29
      %s23 = sphi 0, %s21
      %s24 = sphi 0, %s22
      %s25 = sphi 0, %s23
      %s26 = sphi 0, %s24
      %s38 = sphi 0, %s40
      %s41 = sphi 0, %s38
      %s42 = sphi 0, %s41
      %s58 = sphi 0, %s42
      %s64 = sphi 0, %s66
      %s67 = sphi 0, %s64
      %s68 = sphi 0, %s67
      %s84 = sphi 0, %s68
      %s90 = sphi 0, %s92
      %s93 = sphi 0, %s90
      %s94 = sphi 0, %s93
      %s110 = sphi 0, %s94
      %s114 = sphi 0, %s114
      %s116 = sphi 0, %s114
      %s117 = sphi 0, %s116
      %s131 = sphi 0, %s117
      %s135 = sphi 0, %s135
      %s137 = sphi 0, %s135
      %s138 = sphi 0, %s137
      %s152 = sphi 0, %s138
      %s160 = sphi 0, %s162
      %s163 = sphi 0, %s160
      %s164 = sphi 0, %s163
      %s180 = sphi 0, %s164
    $region4: #{tpu_custom_call.1} parent=1 // loop_header_branch
      %17 = sbr.rel (%p15) target = $region8
    $region5: #{tpu_custom_call.1} parent=1 // loop_body
      %s19 = ssub.s32 %s14, 1
      %s20 = ssub.s32 %s14, 2
      %s27 = sadd.s32 1, %s22
      %p28 = scmp.ge.s32.totalorder %s27, 1
      %s29 = scalar_select %p28, 0, %s27
      %s30 = sadd.s32 1, %s21
      %s31 = scalar_select %p28, %s30, %s21
      %p32 = scmp.ge.s32.totalorder %s31, 2
      %s33 = scalar_select %p32, 0, %s31
      %s34 = ssub.s32 %s21, %s33
      %s35 = ssub.s32 %s22, %s29
      %s36 = sor.u32 %s34, %s35
      %p37 = scmp.eq.s32.totalorder %s36, 0
      %s39 = sadd.s32 %s38, 1
      %s40 = scalar_select %p37, %s38, %s39
      %p43 = pneg %p37
      %p44 = scmp.eq.s32.totalorder %s14, 1
      %p45 = por %p43, %p44
      %p46 = scmp.ne.s32.totalorder %s38, %s41
      %p47 = scmp.eq.s32.totalorder %s14, 0
      %p48 = por %p46, %p47
      %p49 = scmp.ne.s32.totalorder %s38, %s41
      %p50 = scmp.eq.s32.totalorder %s19, 1
      %p51 = por %p49, %p50
      %p52 = scmp.ne.s32.totalorder %s41, %s42
      %p53 = scmp.eq.s32.totalorder %s19, 0
      %p54 = por %p52, %p53
      %p55 = scmp.ne.s32.totalorder %s41, %s42
      %p56 = scmp.eq.s32.totalorder %s20, 1
      %p57 = por %p55, %p56
      %p59 = scmp.ne.s32.totalorder %s42, %s58
      %p60 = scmp.eq.s32.totalorder %s20, 0
      %p61 = por %p59, %p60
      %s62 = ssub.s32 %s21, %s33
      %p63 = scmp.eq.s32.totalorder %s62, 0
      %s65 = sadd.s32 %s64, 1
      %s66 = scalar_select %p63, %s64, %s65
      %p69 = pneg %p63
      %p70 = scmp.eq.s32.totalorder %s14, 1
      %p71 = por %p69, %p70
      %p72 = scmp.ne.s32.totalorder %s64, %s67
      %p73 = scmp.eq.s32.totalorder %s14, 0
      %p74 = por %p72, %p73
      %p75 = scmp.ne.s32.totalorder %s64, %s67
      %p76 = scmp.eq.s32.totalorder %s19, 1
      %p77 = por %p75, %p76
      %p78 = scmp.ne.s32.totalorder %s67, %s68
      %p79 = scmp.eq.s32.totalorder %s19, 0
      %p80 = por %p78, %p79
      %p81 = scmp.ne.s32.totalorder %s67, %s68
      %p82 = scmp.eq.s32.totalorder %s20, 1
      %p83 = por %p81, %p82
      %p85 = scmp.ne.s32.totalorder %s68, %s84
      %p86 = scmp.eq.s32.totalorder %s20, 0
      %p87 = por %p85, %p86
      %s88 = ssub.s32 %s21, %s33
      %p89 = scmp.eq.s32.totalorder %s88, 0
      %s91 = sadd.s32 %s90, 1
      %s92 = scalar_select %p89, %s90, %s91
      %p95 = pneg %p89
      %p96 = scmp.eq.s32.totalorder %s14, 1
      %p97 = por %p95, %p96
      %p98 = scmp.ne.s32.totalorder %s90, %s93
      %p99 = scmp.eq.s32.totalorder %s14, 0
      %p100 = por %p98, %p99
      %p101 = scmp.ne.s32.totalorder %s90, %s93
      %p102 = scmp.eq.s32.totalorder %s19, 1
      %p103 = por %p101, %p102
      %p104 = scmp.ne.s32.totalorder %s93, %s94
      %p105 = scmp.eq.s32.totalorder %s19, 0
      %p106 = por %p104, %p105
      %p107 = scmp.ne.s32.totalorder %s93, %s94
      %p108 = scmp.eq.s32.totalorder %s20, 1
      %p109 = por %p107, %p108
      %p111 = scmp.ne.s32.totalorder %s94, %s110
      %p112 = scmp.eq.s32.totalorder %s20, 0
      %p113 = por %p111, %p112
      %s115 = sadd.s32 %s114, 1
      %p118 = scmp.eq.s32.totalorder %s14, 1
      %p119 = scmp.ne.s32.totalorder %s114, %s116
      %p120 = scmp.eq.s32.totalorder %s14, 0
      %p121 = por %p119, %p120
      %p122 = scmp.ne.s32.totalorder %s114, %s116
      %p123 = scmp.eq.s32.totalorder %s19, 1
      %p124 = por %p122, %p123
      %p125 = scmp.ne.s32.totalorder %s116, %s117
      %p126 = scmp.eq.s32.totalorder %s19, 0
      %p127 = por %p125, %p126
      %p128 = scmp.ne.s32.totalorder %s116, %s117
      %p129 = scmp.eq.s32.totalorder %s20, 1
      %p130 = por %p128, %p129
      %p132 = scmp.ne.s32.totalorder %s117, %s131
      %p133 = scmp.eq.s32.totalorder %s20, 0
      %p134 = por %p132, %p133
      %s136 = sadd.s32 %s135, 1
      %p139 = scmp.eq.s32.totalorder %s14, 1
      %p140 = scmp.ne.s32.totalorder %s135, %s137
      %p141 = scmp.eq.s32.totalorder %s14, 0
      %p142 = por %p140, %p141
      %p143 = scmp.ne.s32.totalorder %s135, %s137
      %p144 = scmp.eq.s32.totalorder %s19, 1
      %p145 = por %p143, %p144
      %p146 = scmp.ne.s32.totalorder %s137, %s138
      %p147 = scmp.eq.s32.totalorder %s19, 0
      %p148 = por %p146, %p147
      %p149 = scmp.ne.s32.totalorder %s137, %s138
      %p150 = scmp.eq.s32.totalorder %s20, 1
      %p151 = por %p149, %p150
      %p153 = scmp.ne.s32.totalorder %s138, %s152
      %p154 = scmp.eq.s32.totalorder %s20, 0
      %p155 = por %p153, %p154
      %s156 = ssub.s32 %s21, %s33
      %s157 = ssub.s32 %s22, %s29
      %s158 = sor.u32 %s156, %s157
      %p159 = scmp.eq.s32.totalorder %s158, 0
      %s161 = sadd.s32 %s160, 1
      %s162 = scalar_select %p159, %s160, %s161
      %p165 = pneg %p159
      %p166 = scmp.eq.s32.totalorder %s14, 1
      %p167 = por %p165, %p166
      %p168 = scmp.ne.s32.totalorder %s160, %s163
      %p169 = scmp.eq.s32.totalorder %s14, 0
      %p170 = por %p168, %p169
      %p171 = scmp.ne.s32.totalorder %s160, %s163
      %p172 = scmp.eq.s32.totalorder %s19, 1
      %p173 = por %p171, %p172
      %p174 = scmp.ne.s32.totalorder %s163, %s164
      %p175 = scmp.eq.s32.totalorder %s19, 0
      %p176 = por %p174, %p175
      %p177 = scmp.ne.s32.totalorder %s163, %s164
      %p178 = scmp.eq.s32.totalorder %s20, 1
      %p179 = por %p177, %p178
      %p181 = scmp.ne.s32.totalorder %s164, %s180
      %p182 = scmp.eq.s32.totalorder %s20, 0
      %p183 = por %p181, %p182
      %p184 = scmp.le.s32.totalorder 1, %s14
      %p185 = scmp.lt.s32.totalorder %s14, 3
      %p186 = pnand %p184, %p185
      %p187 = pneg %p186
      // Predicated region
      $region9: #{tpu_custom_call.1} parent=5 // pred_check
        _
      $region10: #{tpu_custom_call.1} parent=5 // pred_check_branch
        %189 = sbr.rel (%p186) target = $region12
      $region11: #{tpu_custom_call.1} parent=5 // pred_region
        %s190 = ssub.s32 %s14, 1
        // Predicated region
        $region13: #{tpu_custom_call.1} parent=11 // pred_check
          %p191 = pneg %p127
        $region14: #{tpu_custom_call.1} parent=11 // pred_check_branch
          %193 = sbr.rel (%p191) target = $region16
        $region15: #{tpu_custom_call.1} parent=11 // pred_region
          _
        $region16: #{tpu_custom_call.1} parent=11 // pred_fallthru
          _
        // Predicated region
        $region17: #{tpu_custom_call.1} parent=11 // pred_check
          %p194 = pneg %p148
        $region18: #{tpu_custom_call.1} parent=11 // pred_check_branch
          %196 = sbr.rel (%p194) target = $region20
        $region19: #{tpu_custom_call.1} parent=11 // pred_region
          _
        $region20: #{tpu_custom_call.1} parent=11 // pred_fallthru
          _
      $region12: #{tpu_custom_call.1} parent=5 // pred_fallthru
        _
      %p197 = scmp.lt.s32.totalorder %s14, 2
      // Predicated region
      $region21: #{tpu_custom_call.1} parent=5 // pred_check
        %p198 = pneg %p197
      $region22: #{tpu_custom_call.1} parent=5 // pred_check_branch
        %200 = sbr.rel (%p198) target = $region24
      $region23: #{tpu_custom_call.1} parent=5 // pred_region
        // Predicated region
        $region25: #{tpu_custom_call.1} parent=23 // pred_check
          %p201 = pneg %p48
        $region26: #{tpu_custom_call.1} parent=23 // pred_check_branch
          %203 = sbr.rel (%p201) target = $region28
        $region27: #{tpu_custom_call.1} parent=23 // pred_region
          %p204 = scmp.lt.s32.totalorder %s21, 1
          %s205 = scalar_select %p204, %s21, 1
          %p206 = scmp.lt.s32.totalorder %s22, 0
          %s207 = scalar_select %p206, %s22, 0
          %s208 = smul.addr %s205, 8
          %s209 = sadd.s32 %s207, %s208
          %s210 = smul.addr %s209, 8
          %s211 = scalar_lea.vmem %s0, %s210
        $region28: #{tpu_custom_call.1} parent=23 // pred_fallthru
          _
        // Predicated region
        $region29: #{tpu_custom_call.1} parent=23 // pred_check
          %p212 = pneg %p74
        $region30: #{tpu_custom_call.1} parent=23 // pred_check_branch
          %214 = sbr.rel (%p212) target = $region32
        $region31: #{tpu_custom_call.1} parent=23 // pred_region
          %p215 = scmp.lt.s32.totalorder %s21, 1
          %s216 = scalar_select %p215, %s21, 1
          %s217 = smul.addr %s216, 8
          %s218 = smul.addr %s217, 8
          %s219 = scalar_lea.vmem %s1, %s218
        $region32: #{tpu_custom_call.1} parent=23 // pred_fallthru
          _
        // Predicated region
        $region33: #{tpu_custom_call.1} parent=23 // pred_check
          %p220 = pneg %p100
        $region34: #{tpu_custom_call.1} parent=23 // pred_check_branch
          %222 = sbr.rel (%p220) target = $region36
        $region35: #{tpu_custom_call.1} parent=23 // pred_region
          %p223 = scmp.lt.s32.totalorder %s21, 1
          %s224 = scalar_select %p223, %s21, 1
          %s225 = smul.addr %s224, 8
          %s226 = smul.addr %s225, 8
          %s227 = scalar_lea.vmem %s2, %s226
        $region36: #{tpu_custom_call.1} parent=23 // pred_fallthru
          _
      $region24: #{tpu_custom_call.1} parent=5 // pred_fallthru
        _
      %p228 = scmp.le.s32.totalorder 1, %s14
      %p229 = scmp.lt.s32.totalorder %s14, 3
      %p230 = pnand %p228, %p229
      %p231 = pneg %p230
      // Predicated region
      $region37: #{tpu_custom_call.1} parent=5 // pred_check
        _
      $region38: #{tpu_custom_call.1} parent=5 // pred_check_branch
        %233 = sbr.rel (%p230) target = $region40
      $region39: #{tpu_custom_call.1} parent=5 // pred_region
        %s234 = ssub.s32 %s14, 1
        %p235 = scmp.lt.s32.totalorder %s23, 1
        %s236 = scalar_select %p235, %s23, 1
        %p237 = scmp.lt.s32.totalorder %s24, 0
        %s238 = scalar_select %p237, %s24, 0
        %s239 = smul.addr %s236, 8
        %s240 = sadd.s32 %s238, %s239
        %s241 = smul.addr %s240, 8
        %s242 = scalar_lea.vmem %s0, %s241
        %p243 = pneg %p54
        %p244 = pneg %p51
        %p245 = scmp.lt.s32.totalorder %s23, 1
        %s246 = scalar_select %p245, %s23, 1
        %s247 = smul.addr %s246, 8
        %s248 = smul.addr %s247, 8
        %s249 = scalar_lea.vmem %s1, %s248
        %p250 = pneg %p80
        %p251 = pneg %p77
        %p252 = scmp.lt.s32.totalorder %s23, 1
        %s253 = scalar_select %p252, %s23, 1
        %s254 = smul.addr %s253, 8
        %s255 = smul.addr %s254, 8
        %s256 = scalar_lea.vmem %s2, %s255
        %p257 = pneg %p106
        %p258 = pneg %p103
        %p259 = pneg %p127
        %p260 = pneg %p124
        %p261 = pneg %p148
        %p262 = pneg %p145
        %p263 = pneg %p176
        %p264 = pneg %p173
        %s265 = sand.u32 %s163, 1
        %s266 = scalar_lea.sflag [#allocation3], %s265
        %s267 = sand.u32 %s163, 1
        %s268 = smul.addr %s267, 96
        %s269 = scalar_lea.vmem [#allocation2], %s268
        %p270 = scmp.lt.s32.totalorder %s23, 1
        %s271 = scalar_select %p270, %s23, 1
        %p272 = scmp.lt.s32.totalorder %s24, 0
        %s273 = scalar_select %p272, %s24, 0
        %s274 = smul.addr %s271, 8
        %s275 = sadd.s32 %s273, %s274
        %s276 = smul.addr %s275, 8
        %s277 = scalar_lea.vmem %s0, %s276
        %p278 = scmp.lt.s32.totalorder %s23, 1
        %s279 = scalar_select %p278, %s23, 1
        %s280 = smul.addr %s279, 8
        %s281 = smul.addr %s280, 8
        %s282 = scalar_lea.vmem %s1, %s281
        %p283 = scmp.lt.s32.totalorder %s23, 1
        %s284 = scalar_select %p283, %s23, 1
        %s285 = smul.addr %s284, 8
        %s286 = smul.addr %s285, 8
        %s287 = scalar_lea.vmem %s2, %s286
        %v289 = vld [vmem:[%s277] sm:$0xff]
        %v290 = vld [vmem:[%s277 + $0x8] sm:$0xff]
        %v291 = vld [vmem:[%s277 + $0x10] sm:$0xff]
        %v292 = vld [vmem:[%s277 + $0x18] sm:$0xff]
        %v293 = vld [vmem:[%s277 + $0x20] sm:$0xff]
        %v294 = vld [vmem:[%s277 + $0x28] sm:$0xff]
        %v295 = vld [vmem:[%s277 + $0x30] sm:$0xff]
        %v296 = vld [vmem:[%s277 + $0x38] sm:$0xff]
        %v297 = vld [vmem:[%s282] sm:$0xff]
        %v298 = vld [vmem:[%s282 + $0x8] sm:$0xff]
        %v299 = vld [vmem:[%s282 + $0x10] sm:$0xff]
        %v300 = vld [vmem:[%s282 + $0x18] sm:$0xff]
        %v301 = vld [vmem:[%s282 + $0x20] sm:$0xff]
        %v302 = vld [vmem:[%s282 + $0x28] sm:$0xff]
        %v303 = vld [vmem:[%s282 + $0x30] sm:$0xff]
        %v304 = vld [vmem:[%s282 + $0x38] sm:$0xff]
        %306 = vset.pattern.permute.xlu0 0
        %307 = vperm.xlu0 %306, %v297
        %v308 = vpop.permute.xlu0 %307
        %311 = vset.pattern.permute.xlu0 0
        %312 = vperm.xlu0 %311, %v298
        %v313 = vpop.permute.xlu0 %312
        %316 = vset.pattern.permute.xlu0 0
        %317 = vperm.xlu0 %316, %v299
        %v318 = vpop.permute.xlu0 %317
        %321 = vset.pattern.permute.xlu0 0
        %322 = vperm.xlu0 %321, %v300
        %v323 = vpop.permute.xlu0 %322
        %326 = vset.pattern.permute.xlu0 0
        %327 = vperm.xlu0 %326, %v301
        %v328 = vpop.permute.xlu0 %327
        %331 = vset.pattern.permute.xlu0 0
        %332 = vperm.xlu0 %331, %v302
        %v333 = vpop.permute.xlu0 %332
        %336 = vset.pattern.permute.xlu0 0
        %337 = vperm.xlu0 %336, %v303
        %v338 = vpop.permute.xlu0 %337
        %341 = vset.pattern.permute.xlu0 0
        %342 = vperm.xlu0 %341, %v304
        %v343 = vpop.permute.xlu0 %342
        %v345 = vmul.f32 %v289, %v308
        %v346 = vmul.f32 %v290, %v313
        %v347 = vmul.f32 %v291, %v318
        %v348 = vmul.f32 %v292, %v323
        %v349 = vmul.f32 %v293, %v328
        %v350 = vmul.f32 %v294, %v333
        %v351 = vmul.f32 %v295, %v338
        %v352 = vmul.f32 %v296, %v343
        %v353 = vld [vmem:[%s287] sm:$0xff]
        %v354 = vld [vmem:[%s287 + $0x8] sm:$0xff]
        %v355 = vld [vmem:[%s287 + $0x10] sm:$0xff]
        %v356 = vld [vmem:[%s287 + $0x18] sm:$0xff]
        %v357 = vld [vmem:[%s287 + $0x20] sm:$0xff]
        %v358 = vld [vmem:[%s287 + $0x28] sm:$0xff]
        %v359 = vld [vmem:[%s287 + $0x30] sm:$0xff]
        %v360 = vld [vmem:[%s287 + $0x38] sm:$0xff]
        %362 = vset.pattern.permute.xlu0 0
        %363 = vperm.xlu0 %362, %v353
        %v364 = vpop.permute.xlu0 %363
        %367 = vset.pattern.permute.xlu0 0
        %368 = vperm.xlu0 %367, %v354
        %v369 = vpop.permute.xlu0 %368
        %372 = vset.pattern.permute.xlu0 0
        %373 = vperm.xlu0 %372, %v355
        %v374 = vpop.permute.xlu0 %373
        %377 = vset.pattern.permute.xlu0 0
        %378 = vperm.xlu0 %377, %v356
        %v379 = vpop.permute.xlu0 %378
        %382 = vset.pattern.permute.xlu0 0
        %383 = vperm.xlu0 %382, %v357
        %v384 = vpop.permute.xlu0 %383
        %387 = vset.pattern.permute.xlu0 0
        %388 = vperm.xlu0 %387, %v358
        %v389 = vpop.permute.xlu0 %388
        %392 = vset.pattern.permute.xlu0 0
        %393 = vperm.xlu0 %392, %v359
        %v394 = vpop.permute.xlu0 %393
        %397 = vset.pattern.permute.xlu0 0
        %398 = vperm.xlu0 %397, %v360
        %v399 = vpop.permute.xlu0 %398
        %v401 = vadd.f32 %v345, %v364
        %v402 = vadd.f32 %v346, %v369
        %v403 = vadd.f32 %v347, %v374
        %v404 = vadd.f32 %v348, %v379
        %v405 = vadd.f32 %v349, %v384
        %v406 = vadd.f32 %v350, %v389
        %v407 = vadd.f32 %v351, %v394
        %v408 = vadd.f32 %v352, %v399
        %v409 = vpack.c.bf16 %v402, %v401
        %v410 = vpack.c.bf16 %v404, %v403
        %v411 = vpack.c.bf16 %v406, %v405
        %v412 = vpack.c.bf16 %v408, %v407
        %v413 = vld [vmem:[%s3] sm:$0xf]
        %v414 = vld [vmem:[%s3 + $0x4] sm:$0xf]
        %v415 = vld [vmem:[%s3 + $0x8] sm:$0xf]
        %v416 = vld [vmem:[%s3 + $0xc] sm:$0xf]
        %v417 = vld [vmem:[%s3 + $0x10] sm:$0xf]
        %v418 = vld [vmem:[%s3 + $0x14] sm:$0xf]
        %v419 = vld [vmem:[%s3 + $0x18] sm:$0xf]
        %v420 = vld [vmem:[%s3 + $0x1c] sm:$0xf]
        %v421 = vld [vmem:[%s3 + $0x20] sm:$0xf]
        %v422 = vld [vmem:[%s3 + $0x24] sm:$0xf]
        %v423 = vld [vmem:[%s3 + $0x28] sm:$0xf]
        %v424 = vld [vmem:[%s3 + $0x2c] sm:$0xf]
        %v425 = vld [vmem:[%s3 + $0x30] sm:$0xf]
        %v426 = vld [vmem:[%s3 + $0x34] sm:$0xf]
        %v427 = vld [vmem:[%s3 + $0x38] sm:$0xf]
        %v428 = vld [vmem:[%s3 + $0x3c] sm:$0xf]
        %v429 = vld [vmem:[%s3 + $0x40] sm:$0xf]
        %v430 = vld [vmem:[%s3 + $0x44] sm:$0xf]
        %v431 = vld [vmem:[%s3 + $0x48] sm:$0xf]
        %v432 = vld [vmem:[%s3 + $0x4c] sm:$0xf]
        %v433 = vld [vmem:[%s3 + $0x50] sm:$0xf]
        %v434 = vld [vmem:[%s3 + $0x54] sm:$0xf]
        %v435 = vld [vmem:[%s3 + $0x58] sm:$0xf]
        %v436 = vld [vmem:[%s3 + $0x5c] sm:$0xf]
        %v437 = vld [vmem:[%s4] sm:$0xff]
        %v438 = vld [vmem:[%s4 + $0x8] sm:$0xff]
        %v439 = vld [vmem:[%s4 + $0x10] sm:$0xff]
        %v440 = vld [vmem:[%s4 + $0x18] sm:$0xff]
        %v441 = vld [vmem:[%s4 + $0x20] sm:$0xff]
        %v442 = vld [vmem:[%s4 + $0x28] sm:$0xff]
        %v443 = vld [vmem:[%s4 + $0x30] sm:$0xff]
        %v444 = vld [vmem:[%s4 + $0x38] sm:$0xff]
        %v445 = vld [vmem:[%s4 + $0x40] sm:$0xff]
        %v446 = vld [vmem:[%s4 + $0x48] sm:$0xff]
        %v447 = vld [vmem:[%s4 + $0x50] sm:$0xff]
        %v448 = vld [vmem:[%s4 + $0x58] sm:$0xff]
        %v449 = vld [vmem:[%s4 + $0x60] sm:$0xff]
        %v450 = vld [vmem:[%s4 + $0x68] sm:$0xff]
        %v451 = vld [vmem:[%s4 + $0x70] sm:$0xff]
        %v452 = vld [vmem:[%s4 + $0x78] sm:$0xff]
        %v453 = vld [vmem:[%s4 + $0x80] sm:$0xff]
        %v454 = vld [vmem:[%s4 + $0x88] sm:$0xff]
        %v455 = vld [vmem:[%s4 + $0x90] sm:$0xff]
        %v456 = vld [vmem:[%s4 + $0x98] sm:$0xff]
        %v457 = vld [vmem:[%s4 + $0xa0] sm:$0xff]
        %v458 = vld [vmem:[%s4 + $0xa8] sm:$0xff]
        %v459 = vld [vmem:[%s4 + $0xb0] sm:$0xff]
        %v460 = vld [vmem:[%s4 + $0xb8] sm:$0xff]
        %462 = vset.pattern.permute.xlu0 0
        %463 = vperm.xlu0 %462, %v437
        %v464 = vpop.permute.xlu0 %463
        %467 = vset.pattern.permute.xlu0 0
        %468 = vperm.xlu0 %467, %v438
        %v469 = vpop.permute.xlu0 %468
        %472 = vset.pattern.permute.xlu0 0
        %473 = vperm.xlu0 %472, %v439
        %v474 = vpop.permute.xlu0 %473
        %477 = vset.pattern.permute.xlu0 0
        %478 = vperm.xlu0 %477, %v440
        %v479 = vpop.permute.xlu0 %478
        %482 = vset.pattern.permute.xlu0 0
        %483 = vperm.xlu0 %482, %v441
        %v484 = vpop.permute.xlu0 %483
        %487 = vset.pattern.permute.xlu0 0
        %488 = vperm.xlu0 %487, %v442
        %v489 = vpop.permute.xlu0 %488
        %492 = vset.pattern.permute.xlu0 0
        %493 = vperm.xlu0 %492, %v443
        %v494 = vpop.permute.xlu0 %493
        %497 = vset.pattern.permute.xlu0 0
        %498 = vperm.xlu0 %497, %v444
        %v499 = vpop.permute.xlu0 %498
        %502 = vset.pattern.permute.xlu0 0
        %503 = vperm.xlu0 %502, %v445
        %v504 = vpop.permute.xlu0 %503
        %507 = vset.pattern.permute.xlu0 0
        %508 = vperm.xlu0 %507, %v446
        %v509 = vpop.permute.xlu0 %508
        %512 = vset.pattern.permute.xlu0 0
        %513 = vperm.xlu0 %512, %v447
        %v514 = vpop.permute.xlu0 %513
        %517 = vset.pattern.permute.xlu0 0
        %518 = vperm.xlu0 %517, %v448
        %v519 = vpop.permute.xlu0 %518
        %522 = vset.pattern.permute.xlu0 0
        %523 = vperm.xlu0 %522, %v449
        %v524 = vpop.permute.xlu0 %523
        %527 = vset.pattern.permute.xlu0 0
        %528 = vperm.xlu0 %527, %v450
        %v529 = vpop.permute.xlu0 %528
        %532 = vset.pattern.permute.xlu0 0
        %533 = vperm.xlu0 %532, %v451
        %v534 = vpop.permute.xlu0 %533
        %537 = vset.pattern.permute.xlu0 0
        %538 = vperm.xlu0 %537, %v452
        %v539 = vpop.permute.xlu0 %538
        %542 = vset.pattern.permute.xlu0 0
        %543 = vperm.xlu0 %542, %v453
        %v544 = vpop.permute.xlu0 %543
        %547 = vset.pattern.permute.xlu0 0
        %548 = vperm.xlu0 %547, %v454
        %v549 = vpop.permute.xlu0 %548
        %552 = vset.pattern.permute.xlu0 0
        %553 = vperm.xlu0 %552, %v455
        %v554 = vpop.permute.xlu0 %553
        %557 = vset.pattern.permute.xlu0 0
        %558 = vperm.xlu0 %557, %v456
        %v559 = vpop.permute.xlu0 %558
        %562 = vset.pattern.permute.xlu0 0
        %563 = vperm.xlu0 %562, %v457
        %v564 = vpop.permute.xlu0 %563
        %567 = vset.pattern.permute.xlu0 0
        %568 = vperm.xlu0 %567, %v458
        %v569 = vpop.permute.xlu0 %568
        %572 = vset.pattern.permute.xlu0 0
        %573 = vperm.xlu0 %572, %v459
        %v574 = vpop.permute.xlu0 %573
        %577 = vset.pattern.permute.xlu0 0
        %578 = vperm.xlu0 %577, %v460
        %v579 = vpop.permute.xlu0 %578
        %v605 = vunpack.c.l.b16 %v413
        %v606 = vunpack.c.l.b16 %v414
        %v607 = vunpack.c.l.b16 %v415
        %v608 = vunpack.c.l.b16 %v416
        %v609 = vunpack.c.l.b16 %v417
        %v610 = vunpack.c.l.b16 %v418
        %v611 = vunpack.c.l.b16 %v419
        %v612 = vunpack.c.l.b16 %v420
        %v613 = vunpack.c.l.b16 %v421
        %v614 = vunpack.c.l.b16 %v422
        %v615 = vunpack.c.l.b16 %v423
        %v616 = vunpack.c.l.b16 %v424
        %v617 = vunpack.c.l.b16 %v425
        %v618 = vunpack.c.l.b16 %v426
        %v619 = vunpack.c.l.b16 %v427
        %v620 = vunpack.c.l.b16 %v428
        %v621 = vunpack.c.l.b16 %v429
        %v622 = vunpack.c.l.b16 %v430
        %v623 = vunpack.c.l.b16 %v431
        %v624 = vunpack.c.l.b16 %v432
        %v625 = vunpack.c.l.b16 %v433
        %v626 = vunpack.c.l.b16 %v434
        %v627 = vunpack.c.l.b16 %v435
        %v628 = vunpack.c.l.b16 %v436
        %v629 = vpack.c.b16 %v606, %v605
        %v630 = vpack.c.b16 %v608, %v607
        %v631 = vpack.c.b16 %v610, %v609
        %v632 = vpack.c.b16 %v612, %v611
        %v633 = vpack.c.b16 %v614, %v613
        %v634 = vpack.c.b16 %v616, %v615
        %v635 = vpack.c.b16 %v618, %v617
        %v636 = vpack.c.b16 %v620, %v619
        %v637 = vpack.c.b16 %v622, %v621
        %v638 = vpack.c.b16 %v624, %v623
        %v639 = vpack.c.b16 %v626, %v625
        %v640 = vpack.c.b16 %v628, %v627
        %vm641 = vcmask 523264
        %v643 = vsel %vm641, %v629, 0
        %v646 = vsel %vm641, %v630, 0
        %v649 = vsel %vm641, %v631, 0
        %v652 = vsel %vm641, %v632, 0
        %v655 = vsel %vm641, %v633, 0
        %v658 = vsel %vm641, %v634, 0
        %v661 = vsel %vm641, %v635, 0
        %v664 = vsel %vm641, %v636, 0
        %v667 = vsel %vm641, %v637, 0
        %v670 = vsel %vm641, %v638, 0
        %v673 = vsel %vm641, %v639, 0
        %v676 = vsel %vm641, %v640, 0
        %678 = vmatprep.subr.bf16.mxu0 0
        %679 = vmatpush1.bf16.msra.mxu0 0
        %680 = vmatprep.subr.bf16.mxu0 0
        %681 = vmatpush1.bf16.msra.mxu0 0
        %682 = vmatprep.subr.bf16.mxu0 0
        %683 = vmatpush1.bf16.msra.mxu0 0
        %684 = vmatprep.subr.bf16.mxu0 0
        %685 = vmatpush1.bf16.msra.mxu0 0
        %686 = vmatprep.subr.bf16.mxu0 0
        %687 = vmatpush1.bf16.msra.mxu0 %v412
        %688 = vmatprep.subr.bf16.mxu0 0
        %689 = vmatpush1.bf16.msra.mxu0 %v411
        %690 = vmatprep.subr.bf16.mxu0 0
        %691 = vmatpush1.bf16.msra.mxu0 %v410
        %692 = vmatprep.subr.bf16.mxu0 0
        %693 = vmatpush1.bf16.msra.mxu0 %v409
        %694 = vmatprep.subr.bf16.mxu0 0
        %695 = vmatpush2.bf16.msra.mxu0 0
        %696 = vmatprep.subr.bf16.mxu0 0
        %697 = vmatpush2.bf16.msra.mxu0 0
        %698 = vmatprep.subr.bf16.mxu0 0
        %699 = vmatpush2.bf16.msra.mxu0 0
        %700 = vmatprep.subr.bf16.mxu0 0
        %701 = vmatpush2.bf16.msra.mxu0 0
        %702 = vmatprep.subr.bf16.mxu0 0
        %703 = vmatpush2.bf16.msra.mxu0 0
        %704 = vmatprep.subr.bf16.mxu0 0
        %705 = vmatpush2.bf16.msra.mxu0 0
        %706 = vmatprep.subr.bf16.mxu0 0
        %707 = vmatpush2.bf16.msra.mxu0 0
        %708 = vmatprep.subr.bf16.mxu0 0
        %709 = vmatpush2.bf16.msra.mxu0 0
        %710 = vmatprep.mubr.bf16.mxu0 0
        %711 = vmatmul.mubr.bf16.gmra.mxu0 %v643
        %v712 = vpop.f32.mrf.mxu0
        %v713 = vadd.f32 %v464, %v712
        %v714 = vpop.f32.mrf.mxu0
        %v715 = vpop.f32.mrf.mxu0
        %v716 = vadd.f32 %v469, %v715
        %v717 = vpop.f32.mrf.mxu0
        %718 = vmatprep.mubr.bf16.mxu0 0
        %719 = vmatmul.mubr.bf16.gmra.mxu0 %v646
        %v720 = vpop.f32.mrf.mxu0
        %v721 = vadd.f32 %v474, %v720
        %v722 = vpop.f32.mrf.mxu0
        %v723 = vpop.f32.mrf.mxu0
        %v724 = vadd.f32 %v479, %v723
        %v725 = vpop.f32.mrf.mxu0
        %726 = vmatprep.mubr.bf16.mxu0 0
        %727 = vmatmul.mubr.bf16.gmra.mxu0 %v649
        %v728 = vpop.f32.mrf.mxu0
        %v729 = vadd.f32 %v484, %v728
        %v730 = vpop.f32.mrf.mxu0
        %v731 = vpop.f32.mrf.mxu0
        %v732 = vadd.f32 %v489, %v731
        %v733 = vpop.f32.mrf.mxu0
        %734 = vmatprep.mubr.bf16.mxu0 0
        %735 = vmatmul.mubr.bf16.gmra.mxu0 %v652
        %v736 = vpop.f32.mrf.mxu0
        %v737 = vadd.f32 %v494, %v736
        %v738 = vpop.f32.mrf.mxu0
        %v739 = vpop.f32.mrf.mxu0
        %v740 = vadd.f32 %v499, %v739
        %v741 = vpop.f32.mrf.mxu0
        %742 = vmatprep.mubr.bf16.mxu0 0
        %743 = vmatmul.mubr.bf16.gmra.mxu0 %v655
        %v744 = vpop.f32.mrf.mxu0
        %v745 = vadd.f32 %v504, %v744
        %v746 = vpop.f32.mrf.mxu0
        %v747 = vpop.f32.mrf.mxu0
        %v748 = vadd.f32 %v509, %v747
        %v749 = vpop.f32.mrf.mxu0
        %750 = vmatprep.mubr.bf16.mxu0 0
        %751 = vmatmul.mubr.bf16.gmra.mxu0 %v658
        %v752 = vpop.f32.mrf.mxu0
        %v753 = vadd.f32 %v514, %v752
        %v754 = vpop.f32.mrf.mxu0
        %v755 = vpop.f32.mrf.mxu0
        %v756 = vadd.f32 %v519, %v755
        %v757 = vpop.f32.mrf.mxu0
        %758 = vmatprep.mubr.bf16.mxu0 0
        %759 = vmatmul.mubr.bf16.gmra.mxu0 %v661
        %v760 = vpop.f32.mrf.mxu0
        %v761 = vadd.f32 %v524, %v760
        %v762 = vpop.f32.mrf.mxu0
        %v763 = vpop.f32.mrf.mxu0
        %v764 = vadd.f32 %v529, %v763
        %v765 = vpop.f32.mrf.mxu0
        %766 = vmatprep.mubr.bf16.mxu0 0
        %767 = vmatmul.mubr.bf16.gmra.mxu0 %v664
        %v768 = vpop.f32.mrf.mxu0
        %v769 = vadd.f32 %v534, %v768
        %v770 = vpop.f32.mrf.mxu0
        %v771 = vpop.f32.mrf.mxu0
        %v772 = vadd.f32 %v539, %v771
        %v773 = vpop.f32.mrf.mxu0
        %774 = vmatprep.mubr.bf16.mxu0 0
        %775 = vmatmul.mubr.bf16.gmra.mxu0 %v667
        %v776 = vpop.f32.mrf.mxu0
        %v777 = vadd.f32 %v544, %v776
        %v778 = vpop.f32.mrf.mxu0
        %v779 = vpop.f32.mrf.mxu0
        %v780 = vadd.f32 %v549, %v779
        %v781 = vpop.f32.mrf.mxu0
        %782 = vmatprep.mubr.bf16.mxu0 0
        %783 = vmatmul.mubr.bf16.gmra.mxu0 %v670
        %v784 = vpop.f32.mrf.mxu0
        %v785 = vadd.f32 %v554, %v784
        %v786 = vpop.f32.mrf.mxu0
        %v787 = vpop.f32.mrf.mxu0
        %v788 = vadd.f32 %v559, %v787
        %v789 = vpop.f32.mrf.mxu0
        %790 = vmatprep.mubr.bf16.mxu0 0
        %791 = vmatmul.mubr.bf16.gmra.mxu0 %v673
        %v792 = vpop.f32.mrf.mxu0
        %v793 = vadd.f32 %v564, %v792
        %v794 = vpop.f32.mrf.mxu0
        %v795 = vpop.f32.mrf.mxu0
        %v796 = vadd.f32 %v569, %v795
        %v797 = vpop.f32.mrf.mxu0
        %798 = vmatprep.mubr.bf16.mxu0 0
        %799 = vmatmul.mubr.bf16.gmra.mxu0 %v676
        %v800 = vpop.f32.mrf.mxu0
        %v801 = vadd.f32 %v574, %v800
        %v802 = vpop.f32.mrf.mxu0
        %v803 = vpop.f32.mrf.mxu0
        %v804 = vadd.f32 %v579, %v803
        %v805 = vpop.f32.mrf.mxu0
        %806 = vdwg.mxu0
        %v807 = vpack.c.bf16 %v716, %v713
        %v808 = vpack.c.bf16 %v724, %v721
        %v809 = vpack.c.bf16 %v732, %v729
        %v810 = vpack.c.bf16 %v740, %v737
        %v811 = vpack.c.bf16 %v748, %v745
        %v812 = vpack.c.bf16 %v756, %v753
        %v813 = vpack.c.bf16 %v764, %v761
        %v814 = vpack.c.bf16 %v772, %v769
        %v815 = vpack.c.bf16 %v780, %v777
        %v816 = vpack.c.bf16 %v788, %v785
        %v817 = vpack.c.bf16 %v796, %v793
        %v818 = vpack.c.bf16 %v804, %v801
        %v831 = vunpack.c.l.b16 %v807
        %v832 = vunpack.c.h.b16 %v807
        %v833 = vunpack.c.l.b16 %v808
        %v834 = vunpack.c.h.b16 %v808
        %v835 = vunpack.c.l.b16 %v809
        %v836 = vunpack.c.h.b16 %v809
        %v837 = vunpack.c.l.b16 %v810
        %v838 = vunpack.c.h.b16 %v810
        %v839 = vunpack.c.l.b16 %v811
        %v840 = vunpack.c.h.b16 %v811
        %v841 = vunpack.c.l.b16 %v812
        %v842 = vunpack.c.h.b16 %v812
        %v843 = vunpack.c.l.b16 %v813
        %v844 = vunpack.c.h.b16 %v813
        %v845 = vunpack.c.l.b16 %v814
        %v846 = vunpack.c.h.b16 %v814
        %v847 = vunpack.c.l.b16 %v815
        %v848 = vunpack.c.h.b16 %v815
        %v849 = vunpack.c.l.b16 %v816
        %v850 = vunpack.c.h.b16 %v816
        %v851 = vunpack.c.l.b16 %v817
        %v852 = vunpack.c.h.b16 %v817
        %v853 = vunpack.c.l.b16 %v818
        %v854 = vunpack.c.h.b16 %v818
        %v855 = vpack.c.b16 %v831, %v831
        %v856 = vpack.c.b16 %v832, %v832
        %v857 = vpack.c.b16 %v833, %v833
        %v858 = vpack.c.b16 %v834, %v834
        %v859 = vpack.c.b16 %v835, %v835
        %v860 = vpack.c.b16 %v836, %v836
        %v861 = vpack.c.b16 %v837, %v837
        %v862 = vpack.c.b16 %v838, %v838
        %v863 = vpack.c.b16 %v839, %v839
        %v864 = vpack.c.b16 %v840, %v840
        %v865 = vpack.c.b16 %v841, %v841
        %v866 = vpack.c.b16 %v842, %v842
        %v867 = vpack.c.b16 %v843, %v843
        %v868 = vpack.c.b16 %v844, %v844
        %v869 = vpack.c.b16 %v845, %v845
        %v870 = vpack.c.b16 %v846, %v846
        %v871 = vpack.c.b16 %v847, %v847
        %v872 = vpack.c.b16 %v848, %v848
        %v873 = vpack.c.b16 %v849, %v849
        %v874 = vpack.c.b16 %v850, %v850
        %v875 = vpack.c.b16 %v851, %v851
        %v876 = vpack.c.b16 %v852, %v852
        %v877 = vpack.c.b16 %v853, %v853
        %v878 = vpack.c.b16 %v854, %v854
        %903 = vst [vmem:[%s269] sm:$0xf] %v855
        %904 = vst [vmem:[%s269 + $0x4] sm:$0xf] %v856
        %905 = vst [vmem:[%s269 + $0x8] sm:$0xf] %v857
        %906 = vst [vmem:[%s269 + $0xc] sm:$0xf] %v858
        %907 = vst [vmem:[%s269 + $0x10] sm:$0xf] %v859
        %908 = vst [vmem:[%s269 + $0x14] sm:$0xf] %v860
        %909 = vst [vmem:[%s269 + $0x18] sm:$0xf] %v861
        %910 = vst [vmem:[%s269 + $0x1c] sm:$0xf] %v862
        %911 = vst [vmem:[%s269 + $0x20] sm:$0xf] %v863
        %912 = vst [vmem:[%s269 + $0x24] sm:$0xf] %v864
        %913 = vst [vmem:[%s269 + $0x28] sm:$0xf] %v865
        %914 = vst [vmem:[%s269 + $0x2c] sm:$0xf] %v866
        %915 = vst [vmem:[%s269 + $0x30] sm:$0xf] %v867
        %916 = vst [vmem:[%s269 + $0x34] sm:$0xf] %v868
        %917 = vst [vmem:[%s269 + $0x38] sm:$0xf] %v869
        %918 = vst [vmem:[%s269 + $0x3c] sm:$0xf] %v870
        %919 = vst [vmem:[%s269 + $0x40] sm:$0xf] %v871
        %920 = vst [vmem:[%s269 + $0x44] sm:$0xf] %v872
        %921 = vst [vmem:[%s269 + $0x48] sm:$0xf] %v873
        %922 = vst [vmem:[%s269 + $0x4c] sm:$0xf] %v874
        %923 = vst [vmem:[%s269 + $0x50] sm:$0xf] %v875
        %924 = vst [vmem:[%s269 + $0x54] sm:$0xf] %v876
        %925 = vst [vmem:[%s269 + $0x58] sm:$0xf] %v877
        %926 = vst [vmem:[%s269 + $0x5c] sm:$0xf] %v878
        %s927 = sand.u32 %s163, 1
        %s928 = scalar_lea.sflag [#allocation3], %s927
        %s929 = sand.u32 %s163, 1
        %s930 = smul.addr %s929, 96
        %s931 = scalar_lea.vmem [#allocation2], %s930
        // Predicated region
        $region41: #{tpu_custom_call.1} parent=39 // pred_check
          %p932 = pneg %p173
        $region42: #{tpu_custom_call.1} parent=39 // pred_check_branch
          %934 = sbr.rel (%p932) target = $region44
        $region43: #{tpu_custom_call.1} parent=39 // pred_region
          %s936 = ssub.s32 1536, 1536
          %937 = vsyncadd %s928, %s936
          %s938 = smul.addr %s23, 24
          %s939 = sadd.s32 %s24, %s938
          %s940 = smul.addr %s939, 64
          %s941 = scalar_lea.hbm %s5, %s940
          %s942 = sshll.u32 %s931, 4
          %s943 = int_to_ptr.vmem [resolvable:$true] %s942
          %948 = dma.vmem_to_hbm [thread:$0]  %s943, 1536, %s941, %s928, 64, 64, 4
        $region44: #{tpu_custom_call.1} parent=39 // pred_fallthru
          _
      $region40: #{tpu_custom_call.1} parent=5 // pred_fallthru
        _
      %p949 = scmp.le.s32.totalorder 2, %s14
      // Predicated region
      $region45: #{tpu_custom_call.1} parent=5 // pred_check
        %p950 = pneg %p949
      $region46: #{tpu_custom_call.1} parent=5 // pred_check_branch
        %952 = sbr.rel (%p950) target = $region48
      $region47: #{tpu_custom_call.1} parent=5 // pred_region
        %s953 = ssub.s32 %s14, 2
        // Predicated region
        $region49: #{tpu_custom_call.1} parent=47 // pred_check
          %p954 = pneg %p179
        $region50: #{tpu_custom_call.1} parent=47 // pred_check_branch
          %956 = sbr.rel (%p954) target = $region52
        $region51: #{tpu_custom_call.1} parent=47 // pred_region
          %s957 = sand.u32 %s164, 1
          %s958 = scalar_lea.sflag [#allocation3], %s957
          %s959 = sand.u32 %s164, 1
          %s960 = smul.addr %s959, 96
          %s961 = scalar_lea.vmem [#allocation2], %s960
          %962 = dma.done %s958, 1536
        $region52: #{tpu_custom_call.1} parent=47 // pred_fallthru
          _
      $region48: #{tpu_custom_call.1} parent=5 // pred_fallthru
        _
    $region6: #{tpu_custom_call.1} parent=1 // loop_footer
      %s18 = sadd.s32 1, %s14
    $region7: #{tpu_custom_call.1} parent=1 // loop_footer_branch
      %13 = sbr.rel target = $region3
    $region8: #{tpu_custom_call.1} parent=1 // loop_exit
      _
    %963 = vsyncpa [#allocation3], 1
    %s964 = scalar_lea.sflag [#allocation3], 1
    %965 = vsyncpa %s964, 1

</llo_original>
